<compile_context>
chip_gen: v5e
topology: v5e:2x2
jax: 0.10.0
libtpu: 0.0.40
codegen_flags: <defaults>
</compile_context>

<pallas_src>
import jax
import jax.numpy as jnp
from jax.experimental import pallas as pl
from jax.experimental.pallas import tpu as pltpu


def _sap_kernel(x_ref, w_ref, b_ref, o_ref):
    # x_ref: (Bn, H, T) block of the native-layout input (H on sublanes, T on lanes)
    # w_ref: (H, T)     pre-broadcast linear weight, resident in VMEM
    # b_ref: (1,)       bias scalar in SMEM (f32)
    # o_ref: (Bn, H)    output block
    x = x_ref[...]                       # keep input dtype (bf16 stays bf16 on v6e/v7x VPU)
    w = w_ref[...]                       # same dtype as x
    b = b_ref[0]

    # attention logits over T: dense vreg mul + sublane (H) reduce, f32 accumulation.
    scores = jnp.sum(x * w[None, :, :], axis=1, dtype=jnp.float32) + b   # (Bn, T) f32

    # unnormalized softmax over T (lane axis), fully sublane-dense (Bn, T) tiles.
    m = jnp.max(scores, axis=-1, keepdims=True)            # (Bn, 1)
    e = jnp.exp(scores - m)                                 # (Bn, T)
    s = jnp.sum(e, axis=-1, keepdims=True)                  # (Bn, 1)

    # exp-weighted sum over T, then scale the small (Bn, H) slab by 1/s
    # (deferred normalization: one (Bn, H) mul instead of a (Bn, T) divide).
    pooled = jnp.sum(x * e[:, None, :].astype(x.dtype), axis=-1,
                     dtype=jnp.float32)                     # (Bn, H) f32
    inv = pl.reciprocal(s, approx=False)                    # exact; keeps 1e-5 tolerance
    o_ref[...] = (pooled * inv).astype(o_ref.dtype)


def _round_up(x, m):
    return ((x + m - 1) // m) * m


def _vmem_capacity_bytes(default=64 * 1024 * 1024):
    try:
        return int(pltpu.get_tpu_info().vmem_capacity_bytes)
    except Exception:
        return default  # conservative: v7x per-TC VMEM


def self_attention_pooling(batch_rep, weight, bias, *, block_n=None):
    """batch_rep: (N, H, T) exactly like the PyTorch module. Returns (N, H)."""
    N, H, T = batch_rep.shape
    dtype = batch_rep.dtype
    itemsize = jnp.dtype(dtype).itemsize

    # --- per-generation VMEM budget (padded-tile aware) ----------------------
    vmem_cap = _vmem_capacity_bytes()                         # 64 MiB v7x / 128 MiB v5e,v6e
    vmem_limit = min(48 * 1024 * 1024, (vmem_cap * 5) // 8)   # 40 MiB v7x, 48 MiB v5e/v6e
    target_tile_bytes = min(8 * 1024 * 1024, vmem_limit // 5)

    # One (block_n, H, T) buffer really occupies block_n * rup(H, sublane) * rup(T, 128)
    # * itemsize in VMEM (last two dims are tile-padded), double-buffered by the pipeline.
    sublane = {4: 8, 2: 16, 1: 32}.get(itemsize, 8)
    padded_row_bytes = _round_up(H, sublane) * _round_up(T, 128) * itemsize

    if block_n is None:
        bn = max(1, target_tile_bytes // padded_row_bytes)    # VMEM-constrained rows/step
        # Keep >= ~4 grid steps so DMA/compute overlap and v7x's 2 TCs both get work.
        cap = _round_up(pl.cdiv(N, 4), 8)
        bn = min(bn, cap, N)
        if bn >= 8:
            bn = (bn // 8) * 8                                # sublane-dense output rows
        block_n = int(max(1, bn))

    grid_n = pl.cdiv(N, block_n)

    # nn.Linear weight (1, H) -> pre-broadcast (H, T) in the input dtype (tiny array,
    # stays resident in VMEM; its VMEM tile is 128-lane padded anyway).
    w_b = jnp.broadcast_to(weight.reshape(H, 1).astype(dtype), (H, T))
    b = bias.reshape(1).astype(jnp.float32)

    cost = pl.CostEstimate(
        flops=4 * N * H * T,
        transcendentals=N * T,
        bytes_accessed=N * H * T * itemsize + N * H * itemsize + H * T * itemsize,
    )

    return pl.pallas_call(
        _sap_kernel,
        out_shape=jax.ShapeDtypeStruct((N, H), dtype),
        grid_spec=pltpu.PrefetchScalarGridSpec(
            num_scalar_prefetch=0,
            grid=(grid_n,),
            in_specs=[
                pl.BlockSpec((block_n, H, T), lambda n: (n, 0, 0)),   # x, native layout
                pl.BlockSpec((H, T), lambda n: (0, 0)),               # pre-broadcast weight
                pl.BlockSpec(memory_space=pltpu.MemorySpace.SMEM),    # bias scalar
            ],
            out_specs=pl.BlockSpec((block_n, H), lambda n: (n, 0)),
        ),
        compiler_params=pltpu.CompilerParams(
            dimension_semantics=("parallel",),
            vmem_limit_bytes=int(vmem_limit),
        ),
        cost_estimate=cost,
    )(batch_rep, w_b, b)


def _reference(batch_rep, weight, bias):
    x = jnp.transpose(batch_rep, (0, 2, 1))                  # (N, T, H)
    logits = jnp.einsum("nth,h->nt", x, weight.reshape(-1)) + bias.reshape(())
    att = jax.nn.softmax(logits, axis=1)[..., None]          # (N, T, 1)
    return jnp.sum(x * att, axis=1)                          # (N, H)


if __name__ == "__main__":
    key = jax.random.PRNGKey(0)
    kx, kw, kb, kx2 = jax.random.split(key, 4)

    # Small shapes consistent with the module: N batch, H hidden, T sequence.
    N, H, T = 16, 32, 16
    batch_rep = jax.random.normal(kx, (N, H, T), dtype=jnp.float32)

    # nn.Linear(H, 1): weight (1, H), bias (1,) — deterministic uniform init
    bound = 1.0 / float(H) ** 0.5
    weight = jax.random.uniform(kw, (1, H), minval=-bound, maxval=bound, dtype=jnp.float32)
    bias = jax.random.uniform(kb, (1,), minval=-bound, maxval=bound, dtype=jnp.float32)

    # Default block heuristic: N=16 -> block_n=8, grid_n=2 (pipelined, both TCs busy on v7x).
    out = jax.block_until_ready(self_attention_pooling(batch_rep, weight, bias))
    ref = _reference(batch_rep, weight, bias)
    assert out.shape == (N, H)
    assert jnp.allclose(out, ref, atol=1e-5, rtol=1e-5), "mismatch vs reference (default block)"

    # Exercise an explicit multi-block grid path.
    N2 = 24
    batch_rep2 = jax.random.normal(kx2, (N2, H, T), dtype=jnp.float32)
    out2 = jax.block_until_ready(self_attention_pooling(batch_rep2, weight, bias, block_n=8))
    ref2 = _reference(batch_rep2, weight, bias)
    assert out2.shape == (N2, H)
    assert jnp.allclose(out2, ref2, atol=1e-5, rtol=1e-5), "mismatch vs reference (block_n=8)"

    print("KERNEL_OK")
</pallas_src>

<mosaic_0001>
module attributes {stable_mosaic.version = 11 : i64} {
  func.func @_sap_kernel(%arg0: i32, %arg1: memref<8x32x16xf32, #tpu.memory_space<vmem>>, %arg2: memref<32x16xf32, #tpu.memory_space<vmem>>, %arg3: memref<1xf32, #tpu.memory_space<smem>>, %arg4: memref<8x32xf32, #tpu.memory_space<vmem>>) attributes {dimension_semantics = [#tpu.dimension_semantics<parallel>], iteration_bounds = array<i64: 2>, scalar_prefetch = 0 : i64, scratch_operands = 0 : i64, tpu.core_type = #tpu.core_type<tc>, window_params = [{transform_indices = @transform_0, window_bounds = array<i64: 8, 32, 16>}, {pipeline_mode = #tpu.pipeline_mode<synchronous>, transform_indices = @transform_1, window_bounds = array<i64: 32, 16>}, {transform_indices = @transform_2, window_bounds = array<i64: 1>}, {transform_indices = @transform_3, window_bounds = array<i64: 8, 32>}]} {
    %c0 = arith.constant 0 : index
    %c0_0 = arith.constant 0 : index
    %c0_1 = arith.constant 0 : index
    %0 = vector.load %arg1[%c0, %c0_0, %c0_1] : memref<8x32x16xf32, #tpu.memory_space<vmem>>, vector<8x32x16xf32>
    %c0_2 = arith.constant 0 : index
    %c0_3 = arith.constant 0 : index
    %1 = vector.load %arg2[%c0_2, %c0_3] : memref<32x16xf32, #tpu.memory_space<vmem>>, vector<32x16xf32>
    %c0_4 = arith.constant 0 : index
    %2 = memref.load %arg3[%c0_4] : memref<1xf32, #tpu.memory_space<smem>>
    %3 = vector.shape_cast %1 : vector<32x16xf32> to vector<1x32x16xf32>
    %4 = vector.broadcast %3 : vector<1x32x16xf32> to vector<8x32x16xf32>
    %5 = arith.mulf %0, %4 : vector<8x32x16xf32>
    %cst = arith.constant dense<0.000000e+00> : vector<8x16xf32>
    %6 = vector.multi_reduction <add>, %5, %cst [1] : vector<8x32x16xf32> to vector<8x16xf32>
    %7 = vector.broadcast %2 : f32 to vector<8x16xf32>
    %8 = arith.addf %6, %7 : vector<8x16xf32>
    %cst_5 = arith.constant dense<0xFF800000> : vector<8xf32>
    %9 = vector.multi_reduction <maximumf>, %8, %cst_5 [1] : vector<8x16xf32> to vector<8xf32>
    %10 = vector.shape_cast %9 : vector<8xf32> to vector<8x1xf32>
    %11 = vector.broadcast %10 : vector<8x1xf32> to vector<8x16xf32>
    %12 = arith.subf %8, %11 : vector<8x16xf32>
    %13 = math.exp %12 : vector<8x16xf32>
    %cst_6 = arith.constant dense<0.000000e+00> : vector<8xf32>
    %14 = vector.multi_reduction <add>, %13, %cst_6 [1] : vector<8x16xf32> to vector<8xf32>
    %15 = vector.shape_cast %14 : vector<8xf32> to vector<8x1xf32>
    %16 = vector.shape_cast %13 : vector<8x16xf32> to vector<8x1x16xf32>
    %17 = vector.broadcast %16 : vector<8x1x16xf32> to vector<8x32x16xf32>
    %18 = arith.mulf %0, %17 : vector<8x32x16xf32>
    %cst_7 = arith.constant dense<0.000000e+00> : vector<8x32xf32>
    %19 = vector.multi_reduction <add>, %18, %cst_7 [2] : vector<8x32x16xf32> to vector<8x32xf32>
    %20 = tpu.reciprocal %15 : vector<8x1xf32> -> vector<8x1xf32>
    %21 = vector.broadcast %20 : vector<8x1xf32> to vector<8x32xf32>
    %22 = arith.mulf %19, %21 : vector<8x32xf32>
    %c0_8 = arith.constant 0 : index
    %c0_9 = arith.constant 0 : index
    %23 = vector.load %arg4[%c0_8, %c0_9] : memref<8x32xf32, #tpu.memory_space<vmem>>, vector<8x32xf32>
    tpu.vector_store %arg4[%c0_8, %c0_9], %22 {strides = array<i32>} : memref<8x32xf32, #tpu.memory_space<vmem>>, vector<8x32xf32>,
    return
  }
  func.func @transform_0(%arg0: i32) -> (i32, i32, i32) {
    %c0_i32 = arith.constant 0 : i32
    %c0_i32_0 = arith.constant 0 : i32
    %c0_i32_1 = arith.constant 0 : i32
    return %arg0, %c0_i32, %c0_i32_0 : i32, i32, i32
  }
  func.func @transform_1(%arg0: i32) -> (i32, i32) {
    %c0_i32 = arith.constant 0 : i32
    %c0_i32_0 = arith.constant 0 : i32
    %c0_i32_1 = arith.constant 0 : i32
    return %c0_i32, %c0_i32_0 : i32, i32
  }
  func.func @transform_2(%arg0: i32) -> i32 {
    %c0_i32 = arith.constant 0 : i32
    %c0_i32_0 = arith.constant 0 : i32
    return %c0_i32 : i32
  }
  func.func @transform_3(%arg0: i32) -> (i32, i32) {
    %c0_i32 = arith.constant 0 : i32
    %c0_i32_0 = arith.constant 0 : i32
    return %arg0, %c0_i32 : i32, i32
  }
}

</mosaic_0001>

<llo_original>
// kernel: tpu_custom_call.1
$region0: #{tpu_custom_call.1}
  #allocation0 [shape = 'u32[]', space=smem, size = 0x4, offset = 0x4, fixed_abs, tag = 'smem constant byte address 0x4 - core index']
  #allocation1 [shape = 'u32[72,128]{1,0:T(1,128)}', space=vmem, size = 0x9000, scoped, tag = 'internal scratch']
  #allocation2 [shape = 'f32[1]{0:T(128)S(6)}', space=smem, size = 0x200, scoped, tag = 'scoped memory for tpu_custom_call.1']
  %s0 = inlined_call_operand.vmem [shape: f32[16,32,16], index: 0, kind: input, shape index: {}]
  %s1 = inlined_call_operand.vmem [shape: f32[32,16], index: 1, kind: input, shape index: {}]
  %s2 = inlined_call_operand.<no memory space> [shape: f32[1], index: 2, kind: input, shape index: {}]
  %s3 = inlined_call_operand.hbm [shape: f32[16,32], index: 3, kind: output, shape index: {}]
  %s4 = sld [smem:[#allocation0]]
  $region45: #{tpu_custom_call.1} parent=0
    _
  %s6 = ssub.s32 1, %s4
  %s7 = scalar_select 0, %s6, %s4
  %8 = sst [smem:[#allocation2]] %s2
  $region1: #{tpu_custom_call.1} parent=0
    #allocation3 [shape = 'u8[8192]{0}', space=vmem, size = 0x2000, scoped, tag = 'output window, operand 0']
    #allocation4 [shape = 's32[2]{0}', space=sflag, size = 0x8, scoped, tag = 'scoped memory for tpu_custom_call.1']
    %9 = vsyncpa [#allocation4], 0
    %s10 = scalar_lea.sflag [#allocation4], 1
    %11 = vsyncpa %s10, 0
    loop: start=0, step=1, limit=4
    $region2: #{tpu_custom_call.1} parent=1 // loop_pre_header
      _
    $region3: #{tpu_custom_call.1} parent=1 // loop_header
      %s13 = sphi 0, %s17
      %p14 = scmp.ge.s32.totalorder %s13, 4
      %s23 = sphi 0, %s25
      %s26 = sphi 0, %s23
      %s27 = sphi 0, %s26
      %s43 = sphi 0, %s27
      %s47 = sphi 0, %s47
      %s49 = sphi 0, %s47
      %s50 = sphi 0, %s49
      %s64 = sphi 0, %s50
      %s68 = sphi 0, %s68
      %s70 = sphi 0, %s68
      %s71 = sphi 0, %s70
      %s85 = sphi 0, %s71
      %s91 = sphi 0, %s93
      %s94 = sphi 0, %s91
      %s95 = sphi 0, %s94
      %s111 = sphi 0, %s95
    $region4: #{tpu_custom_call.1} parent=1 // loop_header_branch
      %16 = sbr.rel (%p14) target = $region8
    $region5: #{tpu_custom_call.1} parent=1 // loop_body
      %s18 = ssub.s32 %s13, 1
      %s19 = ssub.s32 %s13, 2
      %s20 = sadd.s32 %s13, 1
      %s21 = ssub.s32 %s13, %s20
      %p22 = scmp.eq.s32.totalorder %s21, 0
      %s24 = sadd.s32 %s23, 1
      %s25 = scalar_select %p22, %s23, %s24
      %p28 = pneg %p22
      %p29 = scmp.eq.s32.totalorder %s13, 1
      %p30 = por %p28, %p29
      %p31 = scmp.ne.s32.totalorder %s23, %s26
      %p32 = scmp.eq.s32.totalorder %s13, 0
      %p33 = por %p31, %p32
      %p34 = scmp.ne.s32.totalorder %s23, %s26
      %p35 = scmp.eq.s32.totalorder %s18, 1
      %p36 = por %p34, %p35
      %p37 = scmp.ne.s32.totalorder %s26, %s27
      %p38 = scmp.eq.s32.totalorder %s18, 0
      %p39 = por %p37, %p38
      %p40 = scmp.ne.s32.totalorder %s26, %s27
      %p41 = scmp.eq.s32.totalorder %s19, 1
      %p42 = por %p40, %p41
      %p44 = scmp.ne.s32.totalorder %s27, %s43
      %p45 = scmp.eq.s32.totalorder %s19, 0
      %p46 = por %p44, %p45
      %s48 = sadd.s32 %s47, 1
      %p51 = scmp.eq.s32.totalorder %s13, 1
      %p52 = scmp.ne.s32.totalorder %s47, %s49
      %p53 = scmp.eq.s32.totalorder %s13, 0
      %p54 = por %p52, %p53
      %p55 = scmp.ne.s32.totalorder %s47, %s49
      %p56 = scmp.eq.s32.totalorder %s18, 1
      %p57 = por %p55, %p56
      %p58 = scmp.ne.s32.totalorder %s49, %s50
      %p59 = scmp.eq.s32.totalorder %s18, 0
      %p60 = por %p58, %p59
      %p61 = scmp.ne.s32.totalorder %s49, %s50
      %p62 = scmp.eq.s32.totalorder %s19, 1
      %p63 = por %p61, %p62
      %p65 = scmp.ne.s32.totalorder %s50, %s64
      %p66 = scmp.eq.s32.totalorder %s19, 0
      %p67 = por %p65, %p66
      %s69 = sadd.s32 %s68, 1
      %p72 = scmp.eq.s32.totalorder %s13, 1
      %p73 = scmp.ne.s32.totalorder %s68, %s70
      %p74 = scmp.eq.s32.totalorder %s13, 0
      %p75 = por %p73, %p74
      %p76 = scmp.ne.s32.totalorder %s68, %s70
      %p77 = scmp.eq.s32.totalorder %s18, 1
      %p78 = por %p76, %p77
      %p79 = scmp.ne.s32.totalorder %s70, %s71
      %p80 = scmp.eq.s32.totalorder %s18, 0
      %p81 = por %p79, %p80
      %p82 = scmp.ne.s32.totalorder %s70, %s71
      %p83 = scmp.eq.s32.totalorder %s19, 1
      %p84 = por %p82, %p83
      %p86 = scmp.ne.s32.totalorder %s71, %s85
      %p87 = scmp.eq.s32.totalorder %s19, 0
      %p88 = por %p86, %p87
      %s89 = ssub.s32 %s13, %s20
      %p90 = scmp.eq.s32.totalorder %s89, 0
      %s92 = sadd.s32 %s91, 1
      %s93 = scalar_select %p90, %s91, %s92
      %p96 = pneg %p90
      %p97 = scmp.eq.s32.totalorder %s13, 1
      %p98 = por %p96, %p97
      %p99 = scmp.ne.s32.totalorder %s91, %s94
      %p100 = scmp.eq.s32.totalorder %s13, 0
      %p101 = por %p99, %p100
      %p102 = scmp.ne.s32.totalorder %s91, %s94
      %p103 = scmp.eq.s32.totalorder %s18, 1
      %p104 = por %p102, %p103
      %p105 = scmp.ne.s32.totalorder %s94, %s95
      %p106 = scmp.eq.s32.totalorder %s18, 0
      %p107 = por %p105, %p106
      %p108 = scmp.ne.s32.totalorder %s94, %s95
      %p109 = scmp.eq.s32.totalorder %s19, 1
      %p110 = por %p108, %p109
      %p112 = scmp.ne.s32.totalorder %s95, %s111
      %p113 = scmp.eq.s32.totalorder %s19, 0
      %p114 = por %p112, %p113
      %p115 = scmp.le.s32.totalorder 1, %s13
      %p116 = scmp.lt.s32.totalorder %s13, 3
      %p117 = pnand %p115, %p116
      %p118 = pneg %p117
      // Predicated region
      $region9: #{tpu_custom_call.1} parent=5 // pred_check
        _
      $region10: #{tpu_custom_call.1} parent=5 // pred_check_branch
        %120 = sbr.rel (%p117) target = $region12
      $region11: #{tpu_custom_call.1} parent=5 // pred_region
        %s121 = ssub.s32 %s13, 1
        // Predicated region
        $region13: #{tpu_custom_call.1} parent=11 // pred_check
          %p122 = pneg %p60
        $region14: #{tpu_custom_call.1} parent=11 // pred_check_branch
          %124 = sbr.rel (%p122) target = $region16
        $region15: #{tpu_custom_call.1} parent=11 // pred_region
          _
        $region16: #{tpu_custom_call.1} parent=11 // pred_fallthru
          _
        // Predicated region
        $region17: #{tpu_custom_call.1} parent=11 // pred_check
          %p125 = pneg %p81
        $region18: #{tpu_custom_call.1} parent=11 // pred_check_branch
          %127 = sbr.rel (%p125) target = $region20
        $region19: #{tpu_custom_call.1} parent=11 // pred_region
          _
        $region20: #{tpu_custom_call.1} parent=11 // pred_fallthru
          _
      $region12: #{tpu_custom_call.1} parent=5 // pred_fallthru
        _
      %p128 = scmp.lt.s32.totalorder %s13, 2
      // Predicated region
      $region21: #{tpu_custom_call.1} parent=5 // pred_check
        %p129 = pneg %p128
      $region22: #{tpu_custom_call.1} parent=5 // pred_check_branch
        %131 = sbr.rel (%p129) target = $region24
      $region23: #{tpu_custom_call.1} parent=5 // pred_region
        // Predicated region
        $region25: #{tpu_custom_call.1} parent=23 // pred_check
          %p132 = pneg %p33
        $region26: #{tpu_custom_call.1} parent=23 // pred_check_branch
          %134 = sbr.rel (%p132) target = $region28
        $region27: #{tpu_custom_call.1} parent=23 // pred_region
          %s135 = smul.u32 8, %s13
          %p136 = scmp.lt.s32.totalorder %s135, 15
          %s137 = scalar_select %p136, %s135, 15
          %s138 = smul.addr %s137, 4
          %s139 = smul.addr %s138, 8
          %s140 = scalar_lea.vmem %s0, %s139
          %s141 = smul.u32 8, %s13
        $region28: #{tpu_custom_call.1} parent=23 // pred_fallthru
          _
      $region24: #{tpu_custom_call.1} parent=5 // pred_fallthru
        _
      %p142 = scmp.le.s32.totalorder 1, %s13
      %p143 = scmp.lt.s32.totalorder %s13, 3
      %p144 = pnand %p142, %p143
      %p145 = pneg %p144
      // Predicated region
      $region29: #{tpu_custom_call.1} parent=5 // pred_check
        _
      $region30: #{tpu_custom_call.1} parent=5 // pred_check_branch
        %147 = sbr.rel (%p144) target = $region32
      $region31: #{tpu_custom_call.1} parent=5 // pred_region
        %s148 = ssub.s32 %s13, 1
        %s149 = smul.u32 8, %s18
        %p150 = scmp.lt.s32.totalorder %s149, 15
        %s151 = scalar_select %p150, %s149, 15
        %s152 = smul.addr %s151, 4
        %s153 = smul.addr %s152, 8
        %s154 = scalar_lea.vmem %s0, %s153
        %p155 = pneg %p39
        %p156 = pneg %p36
        %p157 = pneg %p60
        %p158 = pneg %p57
        %p159 = pneg %p81
        %p160 = pneg %p78
        %p161 = pneg %p107
        %p162 = pneg %p104
        %s163 = sand.u32 %s94, 1
        %s164 = scalar_lea.sflag [#allocation4], %s163
        %s165 = sand.u32 %s94, 1
        %s166 = smul.addr %s165, 8
        %s167 = scalar_lea.vmem [#allocation3], %s166
        %s168 = smul.u32 8, %s18
        %p169 = scmp.lt.s32.totalorder %s168, 15
        %s170 = scalar_select %p169, %s168, 15
        %s171 = smul.addr %s170, 4
        %s172 = smul.addr %s171, 8
        %s173 = scalar_lea.vmem %s0, %s172
        %s174 = smul.u32 8, %s18
        %v175 = vld [vmem:[%s173] sm:$0xff]
        %v176 = vld [vmem:[%s173 + $0x8] sm:$0xff]
        %v177 = vld [vmem:[%s173 + $0x10] sm:$0xff]
        %v178 = vld [vmem:[%s173 + $0x18] sm:$0xff]
        %v179 = vld [vmem:[%s173 + $0x20] sm:$0xff]
        %v180 = vld [vmem:[%s173 + $0x28] sm:$0xff]
        %v181 = vld [vmem:[%s173 + $0x30] sm:$0xff]
        %v182 = vld [vmem:[%s173 + $0x38] sm:$0xff]
        %v183 = vld [vmem:[%s173 + $0x40] sm:$0xff]
        %v184 = vld [vmem:[%s173 + $0x48] sm:$0xff]
        %v185 = vld [vmem:[%s173 + $0x50] sm:$0xff]
        %v186 = vld [vmem:[%s173 + $0x58] sm:$0xff]
        %v187 = vld [vmem:[%s173 + $0x60] sm:$0xff]
        %v188 = vld [vmem:[%s173 + $0x68] sm:$0xff]
        %v189 = vld [vmem:[%s173 + $0x70] sm:$0xff]
        %v190 = vld [vmem:[%s173 + $0x78] sm:$0xff]
        %v191 = vld [vmem:[%s173 + $0x80] sm:$0xff]
        %v192 = vld [vmem:[%s173 + $0x88] sm:$0xff]
        %v193 = vld [vmem:[%s173 + $0x90] sm:$0xff]
        %v194 = vld [vmem:[%s173 + $0x98] sm:$0xff]
        %v195 = vld [vmem:[%s173 + $0xa0] sm:$0xff]
        %v196 = vld [vmem:[%s173 + $0xa8] sm:$0xff]
        %v197 = vld [vmem:[%s173 + $0xb0] sm:$0xff]
        %v198 = vld [vmem:[%s173 + $0xb8] sm:$0xff]
        %v199 = vld [vmem:[%s173 + $0xc0] sm:$0xff]
        %v200 = vld [vmem:[%s173 + $0xc8] sm:$0xff]
        %v201 = vld [vmem:[%s173 + $0xd0] sm:$0xff]
        %v202 = vld [vmem:[%s173 + $0xd8] sm:$0xff]
        %v203 = vld [vmem:[%s173 + $0xe0] sm:$0xff]
        %v204 = vld [vmem:[%s173 + $0xe8] sm:$0xff]
        %v205 = vld [vmem:[%s173 + $0xf0] sm:$0xff]
        %v206 = vld [vmem:[%s173 + $0xf8] sm:$0xff]
        %v207 = vld [vmem:[%s1] sm:$0xff]
        %v208 = vld [vmem:[%s1 + $0x8] sm:$0xff]
        %v209 = vld [vmem:[%s1 + $0x10] sm:$0xff]
        %v210 = vld [vmem:[%s1 + $0x18] sm:$0xff]
        %s211 = sld [smem:[#allocation2]]
        %v212 = vmul.f32 %v175, %v207
        %v213 = vmul.f32 %v176, %v208
        %v214 = vmul.f32 %v177, %v209
        %v215 = vmul.f32 %v178, %v210
        %v216 = vmul.f32 %v179, %v207
        %v217 = vmul.f32 %v180, %v208
        %v218 = vmul.f32 %v181, %v209
        %v219 = vmul.f32 %v182, %v210
        %v220 = vmul.f32 %v183, %v207
        %v221 = vmul.f32 %v184, %v208
        %v222 = vmul.f32 %v185, %v209
        %v223 = vmul.f32 %v186, %v210
        %v224 = vmul.f32 %v187, %v207
        %v225 = vmul.f32 %v188, %v208
        %v226 = vmul.f32 %v189, %v209
        %v227 = vmul.f32 %v190, %v210
        %v228 = vmul.f32 %v191, %v207
        %v229 = vmul.f32 %v192, %v208
        %v230 = vmul.f32 %v193, %v209
        %v231 = vmul.f32 %v194, %v210
        %v232 = vmul.f32 %v195, %v207
        %v233 = vmul.f32 %v196, %v208
        %v234 = vmul.f32 %v197, %v209
        %v235 = vmul.f32 %v198, %v210
        %v236 = vmul.f32 %v199, %v207
        %v237 = vmul.f32 %v200, %v208
        %v238 = vmul.f32 %v201, %v209
        %v239 = vmul.f32 %v202, %v210
        %v240 = vmul.f32 %v203, %v207
        %v241 = vmul.f32 %v204, %v208
        %v242 = vmul.f32 %v205, %v209
        %v243 = vmul.f32 %v206, %v210
        %vm244 = vcmask 130048
        %v245 = vsel %vm244, %v212, 0.0
        %v246 = vsel %vm244, %v213, 0.0
        %v247 = vadd.f32 %v245, %v246
        %v248 = vsel %vm244, %v214, 0.0
        %v249 = vadd.f32 %v247, %v248
        %v250 = vsel %vm244, %v215, 0.0
        %v251 = vadd.f32 %v249, %v250
        %v252 = vrot.slane %v251, 4
        %v253 = vadd.f32 %v251, %v252
        %v254 = vrot.slane %v253, 2
        %v255 = vadd.f32 %v253, %v254
        %v256 = vrot.slane %v255, 1
        %v257 = vadd.f32 %v255, %v256
        %v258 = vsel %vm244, %v216, 0.0
        %v259 = vsel %vm244, %v217, 0.0
        %v260 = vadd.f32 %v258, %v259
        %v261 = vsel %vm244, %v218, 0.0
        %v262 = vadd.f32 %v260, %v261
        %v263 = vsel %vm244, %v219, 0.0
        %v264 = vadd.f32 %v262, %v263
        %v265 = vrot.slane %v264, 4
        %v266 = vadd.f32 %v264, %v265
        %v267 = vrot.slane %v266, 2
        %v268 = vadd.f32 %v266, %v267
        %v269 = vrot.slane %v268, 1
        %v270 = vadd.f32 %v268, %v269
        %v271 = vsel %vm244, %v220, 0.0
        %v272 = vsel %vm244, %v221, 0.0
        %v273 = vadd.f32 %v271, %v272
        %v274 = vsel %vm244, %v222, 0.0
        %v275 = vadd.f32 %v273, %v274
        %v276 = vsel %vm244, %v223, 0.0
        %v277 = vadd.f32 %v275, %v276
        %v278 = vrot.slane %v277, 4
        %v279 = vadd.f32 %v277, %v278
        %v280 = vrot.slane %v279, 2
        %v281 = vadd.f32 %v279, %v280
        %v282 = vrot.slane %v281, 1
        %v283 = vadd.f32 %v281, %v282
        %v284 = vsel %vm244, %v224, 0.0
        %v285 = vsel %vm244, %v225, 0.0
        %v286 = vadd.f32 %v284, %v285
        %v287 = vsel %vm244, %v226, 0.0
        %v288 = vadd.f32 %v286, %v287
        %v289 = vsel %vm244, %v227, 0.0
        %v290 = vadd.f32 %v288, %v289
        %v291 = vrot.slane %v290, 4
        %v292 = vadd.f32 %v290, %v291
        %v293 = vrot.slane %v292, 2
        %v294 = vadd.f32 %v292, %v293
        %v295 = vrot.slane %v294, 1
        %v296 = vadd.f32 %v294, %v295
        %v297 = vsel %vm244, %v228, 0.0
        %v298 = vsel %vm244, %v229, 0.0
        %v299 = vadd.f32 %v297, %v298
        %v300 = vsel %vm244, %v230, 0.0
        %v301 = vadd.f32 %v299, %v300
        %v302 = vsel %vm244, %v231, 0.0
        %v303 = vadd.f32 %v301, %v302
        %v304 = vrot.slane %v303, 4
        %v305 = vadd.f32 %v303, %v304
        %v306 = vrot.slane %v305, 2
        %v307 = vadd.f32 %v305, %v306
        %v308 = vrot.slane %v307, 1
        %v309 = vadd.f32 %v307, %v308
        %v310 = vsel %vm244, %v232, 0.0
        %v311 = vsel %vm244, %v233, 0.0
        %v312 = vadd.f32 %v310, %v311
        %v313 = vsel %vm244, %v234, 0.0
        %v314 = vadd.f32 %v312, %v313
        %v315 = vsel %vm244, %v235, 0.0
        %v316 = vadd.f32 %v314, %v315
        %v317 = vrot.slane %v316, 4
        %v318 = vadd.f32 %v316, %v317
        %v319 = vrot.slane %v318, 2
        %v320 = vadd.f32 %v318, %v319
        %v321 = vrot.slane %v320, 1
        %v322 = vadd.f32 %v320, %v321
        %v323 = vsel %vm244, %v236, 0.0
        %v324 = vsel %vm244, %v237, 0.0
        %v325 = vadd.f32 %v323, %v324
        %v326 = vsel %vm244, %v238, 0.0
        %v327 = vadd.f32 %v325, %v326
        %v328 = vsel %vm244, %v239, 0.0
        %v329 = vadd.f32 %v327, %v328
        %v330 = vrot.slane %v329, 4
        %v331 = vadd.f32 %v329, %v330
        %v332 = vrot.slane %v331, 2
        %v333 = vadd.f32 %v331, %v332
        %v334 = vrot.slane %v333, 1
        %v335 = vadd.f32 %v333, %v334
        %v336 = vsel %vm244, %v240, 0.0
        %v337 = vsel %vm244, %v241, 0.0
        %v338 = vadd.f32 %v336, %v337
        %v339 = vsel %vm244, %v242, 0.0
        %v340 = vadd.f32 %v338, %v339
        %v341 = vsel %vm244, %v243, 0.0
        %v342 = vadd.f32 %v340, %v341
        %v343 = vrot.slane %v342, 4
        %v344 = vadd.f32 %v342, %v343
        %v345 = vrot.slane %v344, 2
        %v346 = vadd.f32 %v344, %v345
        %v347 = vrot.slane %v346, 1
        %v348 = vadd.f32 %v346, %v347
        %v349 = vstv %s211
        %v350 = vadd.f32 %v257, %v349
        %v351 = vadd.f32 %v270, %v349
        %v352 = vadd.f32 %v283, %v349
        %v353 = vadd.f32 %v296, %v349
        %v354 = vadd.f32 %v309, %v349
        %v355 = vadd.f32 %v322, %v349
        %v356 = vadd.f32 %v335, %v349
        %v357 = vadd.f32 %v348, %v349
        %vm366 = vcmask 1041409
        %v367 = vsel %vm366, %v351, %v350
        %vm368 = vcmask 1042434
        %v369 = vsel %vm368, %v352, %v367
        %vm370 = vcmask 1043459
        %v371 = vsel %vm370, %v353, %v369
        %vm372 = vcmask 1044484
        %v373 = vsel %vm372, %v354, %v371
        %vm374 = vcmask 1045509
        %v375 = vsel %vm374, %v355, %v373
        %vm376 = vcmask 1046534
        %v377 = vsel %vm376, %v356, %v375
        %vm378 = vcmask 1047559
        %v379 = vsel %vm378, %v357, %v377
        %v381 = vsel %vm244, %v379, -inf
        %382 = vmax.xlane.f32.xlu0 %v381
        %v383 = vpop.xlane.xlu0 %382
        %v385 = vrot.slane %v383, 1
        %v386 = vrot.slane %v383, 2
        %v387 = vrot.slane %v383, 3
        %v388 = vrot.slane %v383, 4
        %v389 = vrot.slane %v383, 5
        %v390 = vrot.slane %v383, 6
        %v391 = vrot.slane %v383, 7
        %v400 = vsub.f32 %v350, %v383
        %v401 = vsub.f32 %v351, %v385
        %v402 = vsub.f32 %v352, %v386
        %v403 = vsub.f32 %v353, %v387
        %v404 = vsub.f32 %v354, %v388
        %v405 = vsub.f32 %v355, %v389
        %v406 = vsub.f32 %v356, %v390
        %v407 = vsub.f32 %v357, %v391
        %v408 = vmul.f32 %v400, 1.442695
        %v409 = vpow.pop %v408
        %v410 = vmul.f32 %v401, 1.442695
        %v411 = vpow.pop %v410
        %v412 = vmul.f32 %v402, 1.442695
        %v413 = vpow.pop %v412
        %v414 = vmul.f32 %v403, 1.442695
        %v415 = vpow.pop %v414
        %v416 = vmul.f32 %v404, 1.442695
        %v417 = vpow.pop %v416
        %v418 = vmul.f32 %v405, 1.442695
        %v419 = vpow.pop %v418
        %v420 = vmul.f32 %v406, 1.442695
        %v421 = vpow.pop %v420
        %v422 = vmul.f32 %v407, 1.442695
        %v423 = vpow.pop %v422
        %v432 = vrot.slane %v411, 7
        %v433 = vsel %vm366, %v432, %v409
        %v434 = vrot.slane %v413, 6
        %v435 = vsel %vm368, %v434, %v433
        %v436 = vrot.slane %v415, 5
        %v437 = vsel %vm370, %v436, %v435
        %v438 = vrot.slane %v417, 4
        %v439 = vsel %vm372, %v438, %v437
        %v440 = vrot.slane %v419, 3
        %v441 = vsel %vm374, %v440, %v439
        %v442 = vrot.slane %v421, 2
        %v443 = vsel %vm376, %v442, %v441
        %v444 = vrot.slane %v423, 1
        %v445 = vsel %vm378, %v444, %v443
        %v447 = vsel %vm244, %v445, 0.0
        %448 = vadd.xlane.f32.xlu0 %v447
        %v449 = vpop.xlane.xlu0 %448
        %v450 = vperm.slane %v409, 0
        %v451 = vperm.slane %v411, 0
        %v452 = vperm.slane %v413, 0
        %v453 = vperm.slane %v415, 0
        %v454 = vperm.slane %v417, 0
        %v455 = vperm.slane %v419, 0
        %v456 = vperm.slane %v421, 0
        %v457 = vperm.slane %v423, 0
        %v458 = vmul.f32 %v175, %v450
        %v459 = vmul.f32 %v176, %v450
        %v460 = vmul.f32 %v177, %v450
        %v461 = vmul.f32 %v178, %v450
        %v462 = vmul.f32 %v179, %v451
        %v463 = vmul.f32 %v180, %v451
        %v464 = vmul.f32 %v181, %v451
        %v465 = vmul.f32 %v182, %v451
        %v466 = vmul.f32 %v183, %v452
        %v467 = vmul.f32 %v184, %v452
        %v468 = vmul.f32 %v185, %v452
        %v469 = vmul.f32 %v186, %v452
        %v470 = vmul.f32 %v187, %v453
        %v471 = vmul.f32 %v188, %v453
        %v472 = vmul.f32 %v189, %v453
        %v473 = vmul.f32 %v190, %v453
        %v474 = vmul.f32 %v191, %v454
        %v475 = vmul.f32 %v192, %v454
        %v476 = vmul.f32 %v193, %v454
        %v477 = vmul.f32 %v194, %v454
        %v478 = vmul.f32 %v195, %v455
        %v479 = vmul.f32 %v196, %v455
        %v480 = vmul.f32 %v197, %v455
        %v481 = vmul.f32 %v198, %v455
        %v482 = vmul.f32 %v199, %v456
        %v483 = vmul.f32 %v200, %v456
        %v484 = vmul.f32 %v201, %v456
        %v485 = vmul.f32 %v202, %v456
        %v486 = vmul.f32 %v203, %v457
        %v487 = vmul.f32 %v204, %v457
        %v488 = vmul.f32 %v205, %v457
        %v489 = vmul.f32 %v206, %v457
        %v490 = vsel %vm244, %v458, 0.0
        %491 = vadd.xlane.f32.xlu0 %v490
        %v492 = vpop.xlane.xlu0 %491
        %v493 = vsel %vm244, %v459, 0.0
        %494 = vadd.xlane.f32.xlu0 %v493
        %v495 = vpop.xlane.xlu0 %494
        %v496 = vsel %vm244, %v460, 0.0
        %497 = vadd.xlane.f32.xlu0 %v496
        %v498 = vpop.xlane.xlu0 %497
        %v499 = vsel %vm244, %v461, 0.0
        %500 = vadd.xlane.f32.xlu0 %v499
        %v501 = vpop.xlane.xlu0 %500
        %v502 = vsel %vm244, %v462, 0.0
        %503 = vadd.xlane.f32.xlu0 %v502
        %v504 = vpop.xlane.xlu0 %503
        %v505 = vsel %vm244, %v463, 0.0
        %506 = vadd.xlane.f32.xlu0 %v505
        %v507 = vpop.xlane.xlu0 %506
        %v508 = vsel %vm244, %v464, 0.0
        %509 = vadd.xlane.f32.xlu0 %v508
        %v510 = vpop.xlane.xlu0 %509
        %v511 = vsel %vm244, %v465, 0.0
        %512 = vadd.xlane.f32.xlu0 %v511
        %v513 = vpop.xlane.xlu0 %512
        %v514 = vsel %vm244, %v466, 0.0
        %515 = vadd.xlane.f32.xlu0 %v514
        %v516 = vpop.xlane.xlu0 %515
        %v517 = vsel %vm244, %v467, 0.0
        %518 = vadd.xlane.f32.xlu0 %v517
        %v519 = vpop.xlane.xlu0 %518
        %v520 = vsel %vm244, %v468, 0.0
        %521 = vadd.xlane.f32.xlu0 %v520
        %v522 = vpop.xlane.xlu0 %521
        %v523 = vsel %vm244, %v469, 0.0
        %524 = vadd.xlane.f32.xlu0 %v523
        %v525 = vpop.xlane.xlu0 %524
        %v526 = vsel %vm244, %v470, 0.0
        %527 = vadd.xlane.f32.xlu0 %v526
        %v528 = vpop.xlane.xlu0 %527
        %v529 = vsel %vm244, %v471, 0.0
        %530 = vadd.xlane.f32.xlu0 %v529
        %v531 = vpop.xlane.xlu0 %530
        %v532 = vsel %vm244, %v472, 0.0
        %533 = vadd.xlane.f32.xlu0 %v532
        %v534 = vpop.xlane.xlu0 %533
        %v535 = vsel %vm244, %v473, 0.0
        %536 = vadd.xlane.f32.xlu0 %v535
        %v537 = vpop.xlane.xlu0 %536
        %v538 = vsel %vm244, %v474, 0.0
        %539 = vadd.xlane.f32.xlu0 %v538
        %v540 = vpop.xlane.xlu0 %539
        %v541 = vsel %vm244, %v475, 0.0
        %542 = vadd.xlane.f32.xlu0 %v541
        %v543 = vpop.xlane.xlu0 %542
        %v544 = vsel %vm244, %v476, 0.0
        %545 = vadd.xlane.f32.xlu0 %v544
        %v546 = vpop.xlane.xlu0 %545
        %v547 = vsel %vm244, %v477, 0.0
        %548 = vadd.xlane.f32.xlu0 %v547
        %v549 = vpop.xlane.xlu0 %548
        %v550 = vsel %vm244, %v478, 0.0
        %551 = vadd.xlane.f32.xlu0 %v550
        %v552 = vpop.xlane.xlu0 %551
        %v553 = vsel %vm244, %v479, 0.0
        %554 = vadd.xlane.f32.xlu0 %v553
        %v555 = vpop.xlane.xlu0 %554
        %v556 = vsel %vm244, %v480, 0.0
        %557 = vadd.xlane.f32.xlu0 %v556
        %v558 = vpop.xlane.xlu0 %557
        %v559 = vsel %vm244, %v481, 0.0
        %560 = vadd.xlane.f32.xlu0 %v559
        %v561 = vpop.xlane.xlu0 %560
        %v562 = vsel %vm244, %v482, 0.0
        %563 = vadd.xlane.f32.xlu0 %v562
        %v564 = vpop.xlane.xlu0 %563
        %v565 = vsel %vm244, %v483, 0.0
        %566 = vadd.xlane.f32.xlu0 %v565
        %v567 = vpop.xlane.xlu0 %566
        %v568 = vsel %vm244, %v484, 0.0
        %569 = vadd.xlane.f32.xlu0 %v568
        %v570 = vpop.xlane.xlu0 %569
        %v571 = vsel %vm244, %v485, 0.0
        %572 = vadd.xlane.f32.xlu0 %v571
        %v573 = vpop.xlane.xlu0 %572
        %v574 = vsel %vm244, %v486, 0.0
        %575 = vadd.xlane.f32.xlu0 %v574
        %v576 = vpop.xlane.xlu0 %575
        %v577 = vsel %vm244, %v487, 0.0
        %578 = vadd.xlane.f32.xlu0 %v577
        %v579 = vpop.xlane.xlu0 %578
        %v580 = vsel %vm244, %v488, 0.0
        %581 = vadd.xlane.f32.xlu0 %v580
        %v582 = vpop.xlane.xlu0 %581
        %v583 = vsel %vm244, %v489, 0.0
        %584 = vadd.xlane.f32.xlu0 %v583
        %v585 = vpop.xlane.xlu0 %584
        %v586 = vrcp.pop %v449
        %v587 = vmul.f32 %v449, %v586
        %v588 = vsub.f32 1.0, %v587
        %v589 = vmul.f32 %v586, %v588
        %v590 = vadd.f32 %v586, %v589
        %vm591 = vweird.f32 %v449
        %vm592 = vweird.f32 %v586
        %vm593 = vmor %vm591, %vm592
        %v594 = vsel %vm593, %v586, %v590
        %v595 = vand.u32 2147483647, %v449
        %vm596 = vcmp.eq.f32.partialorder %v595, 8.507059e+37
        %v597 = vand.u32 %v449, 2147483648
        %v598 = vor.u32 1.1754944e-38, %v597
        %v599 = vsel %vm596, %v598, %v594
        %v601 = vperm.slane %v599, 0
        %v602 = vperm.slane %v599, 1
        %v603 = vperm.slane %v599, 2
        %v604 = vperm.slane %v599, 3
        %v605 = vperm.slane %v599, 4
        %v606 = vperm.slane %v599, 5
        %v607 = vperm.slane %v599, 6
        %v608 = vperm.slane %v599, 7
        %v617 = vmul.f32 %v492, %v601
        %v618 = vmul.f32 %v495, %v601
        %v619 = vmul.f32 %v498, %v601
        %v620 = vmul.f32 %v501, %v601
        %v621 = vmul.f32 %v504, %v602
        %v622 = vmul.f32 %v507, %v602
        %v623 = vmul.f32 %v510, %v602
        %v624 = vmul.f32 %v513, %v602
        %v625 = vmul.f32 %v516, %v603
        %v626 = vmul.f32 %v519, %v603
        %v627 = vmul.f32 %v522, %v603
        %v628 = vmul.f32 %v525, %v603
        %v629 = vmul.f32 %v528, %v604
        %v630 = vmul.f32 %v531, %v604
        %v631 = vmul.f32 %v534, %v604
        %v632 = vmul.f32 %v537, %v604
        %v633 = vmul.f32 %v540, %v605
        %v634 = vmul.f32 %v543, %v605
        %v635 = vmul.f32 %v546, %v605
        %v636 = vmul.f32 %v549, %v605
        %v637 = vmul.f32 %v552, %v606
        %v638 = vmul.f32 %v555, %v606
        %v639 = vmul.f32 %v558, %v606
        %v640 = vmul.f32 %v561, %v606
        %v641 = vmul.f32 %v564, %v607
        %v642 = vmul.f32 %v567, %v607
        %v643 = vmul.f32 %v570, %v607
        %v644 = vmul.f32 %v573, %v607
        %v645 = vmul.f32 %v576, %v608
        %v646 = vmul.f32 %v579, %v608
        %v647 = vmul.f32 %v582, %v608
        %v648 = vmul.f32 %v585, %v608
        %681 = vset.pattern.permute.xlu0 0
        %682 = vperm.xlu0 %681, %v617
        %v683 = vpop.permute.xlu0 %682
        %684 = vset.pattern.permute.xlu0 0
        %685 = vperm.xlu0 %684, %v618
        %v686 = vpop.permute.xlu0 %685
        %687 = vset.pattern.permute.xlu0 0
        %688 = vperm.xlu0 %687, %v619
        %v689 = vpop.permute.xlu0 %688
        %690 = vset.pattern.permute.xlu0 0
        %691 = vperm.xlu0 %690, %v620
        %v692 = vpop.permute.xlu0 %691
        %693 = vset.pattern.permute.xlu0 0
        %694 = vperm.xlu0 %693, %v621
        %v695 = vpop.permute.xlu0 %694
        %696 = vset.pattern.permute.xlu0 0
        %697 = vperm.xlu0 %696, %v622
        %v698 = vpop.permute.xlu0 %697
        %699 = vset.pattern.permute.xlu0 0
        %700 = vperm.xlu0 %699, %v623
        %v701 = vpop.permute.xlu0 %700
        %702 = vset.pattern.permute.xlu0 0
        %703 = vperm.xlu0 %702, %v624
        %v704 = vpop.permute.xlu0 %703
        %705 = vset.pattern.permute.xlu0 0
        %706 = vperm.xlu0 %705, %v625
        %v707 = vpop.permute.xlu0 %706
        %708 = vset.pattern.permute.xlu0 0
        %709 = vperm.xlu0 %708, %v626
        %v710 = vpop.permute.xlu0 %709
        %711 = vset.pattern.permute.xlu0 0
        %712 = vperm.xlu0 %711, %v627
        %v713 = vpop.permute.xlu0 %712
        %714 = vset.pattern.permute.xlu0 0
        %715 = vperm.xlu0 %714, %v628
        %v716 = vpop.permute.xlu0 %715
        %717 = vset.pattern.permute.xlu0 0
        %718 = vperm.xlu0 %717, %v629
        %v719 = vpop.permute.xlu0 %718
        %720 = vset.pattern.permute.xlu0 0
        %721 = vperm.xlu0 %720, %v630
        %v722 = vpop.permute.xlu0 %721
        %723 = vset.pattern.permute.xlu0 0
        %724 = vperm.xlu0 %723, %v631
        %v725 = vpop.permute.xlu0 %724
        %726 = vset.pattern.permute.xlu0 0
        %727 = vperm.xlu0 %726, %v632
        %v728 = vpop.permute.xlu0 %727
        %729 = vset.pattern.permute.xlu0 0
        %730 = vperm.xlu0 %729, %v633
        %v731 = vpop.permute.xlu0 %730
        %732 = vset.pattern.permute.xlu0 0
        %733 = vperm.xlu0 %732, %v634
        %v734 = vpop.permute.xlu0 %733
        %735 = vset.pattern.permute.xlu0 0
        %736 = vperm.xlu0 %735, %v635
        %v737 = vpop.permute.xlu0 %736
        %738 = vset.pattern.permute.xlu0 0
        %739 = vperm.xlu0 %738, %v636
        %v740 = vpop.permute.xlu0 %739
        %741 = vset.pattern.permute.xlu0 0
        %742 = vperm.xlu0 %741, %v637
        %v743 = vpop.permute.xlu0 %742
        %744 = vset.pattern.permute.xlu0 0
        %745 = vperm.xlu0 %744, %v638
        %v746 = vpop.permute.xlu0 %745
        %747 = vset.pattern.permute.xlu0 0
        %748 = vperm.xlu0 %747, %v639
        %v749 = vpop.permute.xlu0 %748
        %750 = vset.pattern.permute.xlu0 0
        %751 = vperm.xlu0 %750, %v640
        %v752 = vpop.permute.xlu0 %751
        %753 = vset.pattern.permute.xlu0 0
        %754 = vperm.xlu0 %753, %v641
        %v755 = vpop.permute.xlu0 %754
        %756 = vset.pattern.permute.xlu0 0
        %757 = vperm.xlu0 %756, %v642
        %v758 = vpop.permute.xlu0 %757
        %759 = vset.pattern.permute.xlu0 0
        %760 = vperm.xlu0 %759, %v643
        %v761 = vpop.permute.xlu0 %760
        %762 = vset.pattern.permute.xlu0 0
        %763 = vperm.xlu0 %762, %v644
        %v764 = vpop.permute.xlu0 %763
        %765 = vset.pattern.permute.xlu0 0
        %766 = vperm.xlu0 %765, %v645
        %v767 = vpop.permute.xlu0 %766
        %768 = vset.pattern.permute.xlu0 0
        %769 = vperm.xlu0 %768, %v646
        %v770 = vpop.permute.xlu0 %769
        %771 = vset.pattern.permute.xlu0 0
        %772 = vperm.xlu0 %771, %v647
        %v773 = vpop.permute.xlu0 %772
        %774 = vset.pattern.permute.xlu0 0
        %775 = vperm.xlu0 %774, %v648
        %v776 = vpop.permute.xlu0 %775
        %v777 = vlaneseq
        %v778 = vand.u32 %v777, 127
        %v779 = vperm.slane %v683, %v778
        %v780 = vadd.s32 %v778, 4294967288
        %v781 = vperm.slane %v686, %v780
        %vm782 = vcmask 130112
        %v783 = vsel %vm782, %v781, %v779
        %v784 = vadd.s32 %v778, 4294967280
        %v785 = vperm.slane %v689, %v784
        %vm786 = vcmask 195712
        %v787 = vsel %vm786, %v785, %v783
        %v788 = vadd.s32 %v778, 4294967272
        %v789 = vperm.slane %v692, %v788
        %vm790 = vcmask 261312
        %v791 = vsel %vm790, %v789, %v787
        %v792 = vperm.slane %v695, %v778
        %v793 = vperm.slane %v698, %v780
        %v794 = vsel %vm782, %v793, %v792
        %v795 = vperm.slane %v701, %v784
        %v796 = vsel %vm786, %v795, %v794
        %v797 = vperm.slane %v704, %v788
        %v798 = vsel %vm790, %v797, %v796
        %v799 = vperm.slane %v707, %v778
        %v800 = vperm.slane %v710, %v780
        %v801 = vsel %vm782, %v800, %v799
        %v802 = vperm.slane %v713, %v784
        %v803 = vsel %vm786, %v802, %v801
        %v804 = vperm.slane %v716, %v788
        %v805 = vsel %vm790, %v804, %v803
        %v806 = vperm.slane %v719, %v778
        %v807 = vperm.slane %v722, %v780
        %v808 = vsel %vm782, %v807, %v806
        %v809 = vperm.slane %v725, %v784
        %v810 = vsel %vm786, %v809, %v808
        %v811 = vperm.slane %v728, %v788
        %v812 = vsel %vm790, %v811, %v810
        %v813 = vperm.slane %v731, %v778
        %v814 = vperm.slane %v734, %v780
        %v815 = vsel %vm782, %v814, %v813
        %v816 = vperm.slane %v737, %v784
        %v817 = vsel %vm786, %v816, %v815
        %v818 = vperm.slane %v740, %v788
        %v819 = vsel %vm790, %v818, %v817
        %v820 = vperm.slane %v743, %v778
        %v821 = vperm.slane %v746, %v780
        %v822 = vsel %vm782, %v821, %v820
        %v823 = vperm.slane %v749, %v784
        %v824 = vsel %vm786, %v823, %v822
        %v825 = vperm.slane %v752, %v788
        %v826 = vsel %vm790, %v825, %v824
        %v827 = vperm.slane %v755, %v778
        %v828 = vperm.slane %v758, %v780
        %v829 = vsel %vm782, %v828, %v827
        %v830 = vperm.slane %v761, %v784
        %v831 = vsel %vm786, %v830, %v829
        %v832 = vperm.slane %v764, %v788
        %v833 = vsel %vm790, %v832, %v831
        %v834 = vperm.slane %v767, %v778
        %v835 = vperm.slane %v770, %v780
        %v836 = vsel %vm782, %v835, %v834
        %v837 = vperm.slane %v773, %v784
        %v838 = vsel %vm786, %v837, %v836
        %v839 = vperm.slane %v776, %v788
        %v840 = vsel %vm790, %v839, %v838
        %v841 = vsel %vm366, %v798, %v791
        %v842 = vsel %vm368, %v805, %v841
        %v843 = vsel %vm370, %v812, %v842
        %v844 = vsel %vm372, %v819, %v843
        %v845 = vsel %vm374, %v826, %v844
        %v846 = vsel %vm376, %v833, %v845
        %v847 = vsel %vm378, %v840, %v846
        %vm849 = vcmask 261120
        %850 = vst.msk [vmem:[%s167] sm:$0xff] %vm849, %v847
        %s851 = sand.u32 %s94, 1
        %s852 = scalar_lea.sflag [#allocation4], %s851
        %s853 = sand.u32 %s94, 1
        %s854 = smul.addr %s853, 8
        %s855 = scalar_lea.vmem [#allocation3], %s854
        // Predicated region
        $region33: #{tpu_custom_call.1} parent=31 // pred_check
          %p856 = pneg %p104
        $region34: #{tpu_custom_call.1} parent=31 // pred_check_branch
          %858 = sbr.rel (%p856) target = $region36
        $region35: #{tpu_custom_call.1} parent=31 // pred_region
          %860 = vsyncadd %s852, 0
          %s861 = smul.addr %s18, 8
          %s862 = scalar_lea.hbm %s3, %s861
          %s864 = sshll.u32 %s855, 4
          %s865 = int_to_ptr.vmem [resolvable:$true] %s864
          %s866 = sshll.u32 %s862, 4
          %s867 = int_to_ptr.hbm [resolvable:$true] %s866
          %869 = dma.vmem_to_hbm [thread:$0]  %s865, 128, %s867, %s852
        $region36: #{tpu_custom_call.1} parent=31 // pred_fallthru
          _
      $region32: #{tpu_custom_call.1} parent=5 // pred_fallthru
        _
      %p870 = scmp.le.s32.totalorder 2, %s13
      // Predicated region
      $region37: #{tpu_custom_call.1} parent=5 // pred_check
        %p871 = pneg %p870
      $region38: #{tpu_custom_call.1} parent=5 // pred_check_branch
        %873 = sbr.rel (%p871) target = $region40
      $region39: #{tpu_custom_call.1} parent=5 // pred_region
        %s874 = ssub.s32 %s13, 2
        // Predicated region
        $region41: #{tpu_custom_call.1} parent=39 // pred_check
          %p875 = pneg %p110
        $region42: #{tpu_custom_call.1} parent=39 // pred_check_branch
          %877 = sbr.rel (%p875) target = $region44
        $region43: #{tpu_custom_call.1} parent=39 // pred_region
          %s878 = sand.u32 %s95, 1
          %s879 = scalar_lea.sflag [#allocation4], %s878
          %s880 = sand.u32 %s95, 1
          %s881 = smul.addr %s880, 8
          %s882 = scalar_lea.vmem [#allocation3], %s881
          %884 = dma.done %s879, 128
        $region44: #{tpu_custom_call.1} parent=39 // pred_fallthru
          _
      $region40: #{tpu_custom_call.1} parent=5 // pred_fallthru
        _
    $region6: #{tpu_custom_call.1} parent=1 // loop_footer
      %s17 = sadd.s32 1, %s13
    $region7: #{tpu_custom_call.1} parent=1 // loop_footer_branch
      %12 = sbr.rel target = $region3
    $region8: #{tpu_custom_call.1} parent=1 // loop_exit
      _
    %885 = vsyncpa [#allocation4], 1
    %s886 = scalar_lea.sflag [#allocation4], 1
    %887 = vsyncpa %s886, 1

</llo_original>
